<compile_context>
chip_gen: v7x
topology: tpu7x:2x2x1
jax: 0.10.0
libtpu: 0.0.40
codegen_flags: <defaults>
</compile_context>

<pallas_src>
import jax
import jax.numpy as jnp
from jax.experimental import pallas as pl
from jax.experimental.pallas import tpu as pltpu


_LANE_CANDIDATES = (2048, 1024, 512, 256, 128)
# 2 MiB per tile: (1 in + 1 out) x double-buffer ~= 8 MiB VMEM -> fits the
# default scoped VMEM limit on v5e (16 MiB) and v6e/v7x (32 MiB) with headroom.
_MAX_TILE_BYTES = 2 * 1024 * 1024


def _identity_copy_kernel(x_ref, o_ref):
    # Pure whole-tile copy: full-width (lane-dense) load + store, no VPU work.
    o_ref[...] = x_ref[...]


def _sublane_step(itemsize: int) -> int:
    # Native minimal sublane tile: 8 rows for 32-bit, 16 for 16-bit, 32 for
    # 8-bit dtypes (sub-32-bit packs along sublanes).
    return max(8, 32 // itemsize)


def _choose_2d_layout(total_elems: int, itemsize: int):
    """Pick a lane-dense (rows, lane) view and a row tile for the copy.

    Returns (rows, lane, row_tile) or None if no clean 2-D factorization exists.
    """
    sub = _sublane_step(itemsize)

    # Prefer the widest lane dim that still leaves >= 4*sub rows so the grid
    # can have >= 4 steps (>= 2 per TensorCore on v7x); otherwise take any
    # lane multiple of 128 whose row count is a multiple of the sublane step.
    lane = None
    for cand in _LANE_CANDIDATES:
        if total_elems % cand == 0:
            rows = total_elems // cand
            if rows % sub == 0 and rows >= 4 * sub:
                lane = cand
                break
    if lane is None:
        for cand in _LANE_CANDIDATES:
            if total_elems % cand == 0 and (total_elems // cand) % sub == 0:
                lane = cand
                break
    if lane is None:
        return None

    rows = total_elems // lane
    max_rows_per_tile = max(sub, _MAX_TILE_BYTES // (lane * itemsize))
    limit = min(rows, max_rows_per_tile)

    # Row tiles must be a multiple of the dtype sublane step and divide rows.
    valid = [rt for rt in range(sub, limit + 1, sub) if rows % rt == 0]
    if not valid:
        return None

    # Prefer >= 4 grid steps (v7x: both cores pipeline), then >= 2, then any.
    ge4 = [rt for rt in valid if rows // rt >= 4]
    ge2 = [rt for rt in valid if rows // rt >= 2]
    if ge4:
        row_tile = max(ge4)
    elif ge2:
        row_tile = max(ge2)
    else:
        row_tile = max(valid)
    return rows, lane, row_tile


def _copy_2d(x2d: jax.Array, layout) -> jax.Array:
    rows, lane, row_tile = layout
    grid = (rows // row_tile,)
    return pl.pallas_call(
        _identity_copy_kernel,
        out_shape=jax.ShapeDtypeStruct((rows, lane), x2d.dtype),
        grid=grid,
        in_specs=[pl.BlockSpec((row_tile, lane), lambda i: (i, 0))],
        out_specs=pl.BlockSpec((row_tile, lane), lambda i: (i, 0)),
        compiler_params=pltpu.CompilerParams(
            dimension_semantics=("parallel",),
        ),
    )(x2d)


def identity(x: jax.Array) -> jax.Array:
    """Pallas identity: y = x, same shape and dtype."""
    total = x.size
    if total == 0:
        return x

    itemsize = jnp.dtype(x.dtype).itemsize
    layout = _choose_2d_layout(total, itemsize)

    if layout is not None:
        rows, lane, _ = layout
        y2d = _copy_2d(x.reshape(rows, lane), layout)
        return y2d.reshape(x.shape)

    # Fallback (element count not a clean multiple of the native tile): pad the
    # flattened array up to a (rows, 128) slab, run the same tiled pipelined
    # copy, then slice back.  Avoids the single-giant-block VMEM-OOM cliff.
    sub = _sublane_step(itemsize)
    chunk = sub * 128
    padded = ((total + chunk - 1) // chunk) * chunk
    flat = jnp.pad(x.reshape(-1), (0, padded - total))
    layout = _choose_2d_layout(padded, itemsize)
    rows, lane, _ = layout
    y2d = _copy_2d(flat.reshape(rows, lane), layout)
    return y2d.reshape(-1)[:total].reshape(x.shape)


if __name__ == "__main__":
    key = jax.random.PRNGKey(0)
    x = jax.random.normal(key, (2, 4, 16, 16), dtype=jnp.float32)

    y = identity(x)
    jax.block_until_ready(y)

    assert y.shape == x.shape and y.dtype == x.dtype
    assert bool(jnp.array_equal(y, x))

    # Exercise the padded fallback path too (odd element count).
    x_odd = jax.random.normal(key, (3, 5, 7), dtype=jnp.float32)
    y_odd = identity(x_odd)
    jax.block_until_ready(y_odd)
    assert bool(jnp.array_equal(y_odd, x_odd))

    print("KERNEL_OK")
</pallas_src>

<mosaic_0001>
module attributes {stable_mosaic.version = 11 : i64} {
  func.func @_identity_copy_kernel(%arg0: i32, %arg1: memref<8x256xf32, #tpu.memory_space<vmem>>, %arg2: memref<8x256xf32, #tpu.memory_space<vmem>>) attributes {dimension_semantics = [#tpu.dimension_semantics<parallel>], iteration_bounds = array<i64: 1>, scalar_prefetch = 0 : i64, scratch_operands = 0 : i64, tpu.core_type = #tpu.core_type<tc>, window_params = [{transform_indices = @transform_0, window_bounds = array<i64: 8, 256>}, {transform_indices = @transform_1, window_bounds = array<i64: 8, 256>}]} {
    %c0 = arith.constant 0 : index
    %c0_0 = arith.constant 0 : index
    %0 = vector.load %arg1[%c0, %c0_0] : memref<8x256xf32, #tpu.memory_space<vmem>>, vector<8x256xf32>
    %c0_1 = arith.constant 0 : index
    %c0_2 = arith.constant 0 : index
    %1 = vector.load %arg2[%c0_1, %c0_2] : memref<8x256xf32, #tpu.memory_space<vmem>>, vector<8x256xf32>
    tpu.vector_store %arg2[%c0_1, %c0_2], %0 {strides = array<i32>} : memref<8x256xf32, #tpu.memory_space<vmem>>, vector<8x256xf32>,
    return
  }
  func.func @transform_0(%arg0: i32) -> (i32, i32) {
    %c0_i32 = arith.constant 0 : i32
    %c0_i32_0 = arith.constant 0 : i32
    return %arg0, %c0_i32 : i32, i32
  }
  func.func @transform_1(%arg0: i32) -> (i32, i32) {
    %c0_i32 = arith.constant 0 : i32
    %c0_i32_0 = arith.constant 0 : i32
    return %arg0, %c0_i32 : i32, i32
  }
}

</mosaic_0001>

<llo_original>
// kernel: tpu_custom_call.1
$region0: #{tpu_custom_call.1}
  #allocation0 [shape = 'u32[]', space=smem, size = 0x4, offset = 0x4, fixed_abs, tag = 'smem constant byte address 0x4 - core index']
  #allocation1 [shape = 'u32[144,128]{1,0:T(1,128)}', space=vmem, size = 0x12000, scoped, tag = 'internal scratch']
  %s0 = inlined_call_operand.hbm [shape: f32[8,256], index: 0, kind: input, shape index: {}]
  %s1 = inlined_call_operand.hbm [shape: f32[8,256], index: 1, kind: output, shape index: {}]
  %s2 = sld [smem:[#allocation0]]
  $region18: #{tpu_custom_call.1} parent=0
    _
  %s4 = ssub.s32 1, %s2
  %s5 = scalar_select 0, %s4, %s2
  $region1: #{tpu_custom_call.1} parent=0
    #allocation2 [shape = 'u8[8192]{0}', space=vmem, size = 0x2000, scoped, tag = 'input window, operand 0, single buffered']
    #allocation3 [shape = 's32[1]{0}', space=sflag, size = 0x4, scoped, tag = 'scoped memory for tpu_custom_call.1']
    #allocation4 [shape = 's32[1]{0}', space=sflag, size = 0x4, scoped, tag = 'scoped memory for tpu_custom_call.1']
    #allocation5 [shape = 'u8[8192]{0}', space=vmem, size = 0x2000, scoped, tag = 'output window, operand 0, single buffered']
    %6 = vsyncpa [#allocation3], 0
    %7 = vsyncpa [#allocation4], 0
    // Predicated region
    $region2: #{tpu_custom_call.1} parent=1 // pred_check
      _
    $region3: #{tpu_custom_call.1} parent=1 // pred_check_branch
      %9 = sbr.rel (0) target = $region5
    $region4: #{tpu_custom_call.1} parent=1 // pred_region
      %s11 = ssub.s32 256, 256
      %12 = vsyncadd [#allocation3], %s11
      %s14 = sshll.u32 [#allocation2], 4
      %s15 = int_to_ptr.vmem [resolvable:$true] %s14
      %17 = dma.hbm_to_vmem [thread:$0]  %s0, 256, %s15, [#allocation3]
    $region5: #{tpu_custom_call.1} parent=1 // pred_fallthru
      _
    // Predicated region
    $region6: #{tpu_custom_call.1} parent=1 // pred_check
      _
    $region7: #{tpu_custom_call.1} parent=1 // pred_check_branch
      %19 = sbr.rel (0) target = $region9
    $region8: #{tpu_custom_call.1} parent=1 // pred_region
      %20 = dma.done [#allocation3], 256
    $region9: #{tpu_custom_call.1} parent=1 // pred_fallthru
      _
    %v21 = vld [vmem:[#allocation2] sm:$0xff]
    %v22 = vld [vmem:[#allocation2 + $0x8] sm:$0xff]
    %23 = vst [vmem:[#allocation5] sm:$0xff] %v21
    %24 = vst [vmem:[#allocation5 + $0x8] sm:$0xff] %v22
    // Predicated region
    $region10: #{tpu_custom_call.1} parent=1 // pred_check
      _
    $region11: #{tpu_custom_call.1} parent=1 // pred_check_branch
      %26 = sbr.rel (0) target = $region13
    $region12: #{tpu_custom_call.1} parent=1 // pred_region
      %s28 = ssub.s32 256, 256
      %29 = vsyncadd [#allocation4], %s28
      %s31 = sshll.u32 [#allocation5], 4
      %s32 = int_to_ptr.vmem [resolvable:$true] %s31
      %34 = dma.vmem_to_hbm [thread:$0]  %s32, 256, %s1, [#allocation4]
    $region13: #{tpu_custom_call.1} parent=1 // pred_fallthru
      _
    // Predicated region
    $region14: #{tpu_custom_call.1} parent=1 // pred_check
      _
    $region15: #{tpu_custom_call.1} parent=1 // pred_check_branch
      %36 = sbr.rel (0) target = $region17
    $region16: #{tpu_custom_call.1} parent=1 // pred_region
      %37 = dma.done [#allocation4], 256
    $region17: #{tpu_custom_call.1} parent=1 // pred_fallthru
      _
    %38 = vsyncpa [#allocation3], 1
    %39 = vsyncpa [#allocation4], 1

</llo_original>
